<compile_context>
chip_gen: v6e
topology: v6e:2x2x1
jax: 0.10.0
libtpu: 0.0.40
codegen_flags: <defaults>
</compile_context>

<pallas_src>
import functools
import math

import jax
import jax.numpy as jnp
from jax import lax
from jax.experimental import pallas as pl
from jax.experimental.pallas import tpu as pltpu


def _cdiv(a: int, b: int) -> int:
    return -(-a // b)


def _round_up(x: int, m: int) -> int:
    return _cdiv(x, m) * m


def _sublane_pack(dtype) -> int:
    # f32 -> 8 sublanes, bf16/f16 -> 16, int8/fp8 -> 32.
    itemsize = jnp.dtype(dtype).itemsize
    return max(8, 32 // max(itemsize, 1))


# Budget for the pipelined VMEM footprint: 2x(in+out) tiles plus ~2 f32
# intermediate tiles.  16 MiB is far past the HBM-roofline knee on all
# generations and leaves large headroom even on v7x (64 MiB physical VMEM).
_TILE_FOOTPRINT_BUDGET = 16 * 1024 * 1024
# Cap a single input-tile DMA at ~2 MiB: per-step transfer time stays well
# above the ~0.35 us grid-step overhead on every generation.
_MAX_IN_TILE_BYTES = 2 * 1024 * 1024
# Target at least this many grid steps so double-buffering reaches steady
# state (>= 4 steps per TensorCore on v7x's 2-TC chips; also helps v5e/v6e).
_MIN_GRID_STEPS = 8


def _pick_block_rows(rows: int, dim: int, x_dtype, out_dtype) -> int:
    """Row tile: dtype-aligned, VMEM-safe, pipeline-friendly."""
    pack = max(_sublane_pack(x_dtype), _sublane_pack(out_dtype))
    in_b = jnp.dtype(x_dtype).itemsize
    out_b = jnp.dtype(out_dtype).itemsize

    # Per-row footprint: double-buffered in + out tiles plus ~2 f32
    # intermediates (x32 and normed) held live by the kernel body.
    per_row = dim * (2 * (in_b + out_b) + 2 * 4)
    br = max(pack, (_TILE_FOOTPRINT_BUDGET // max(per_row, 1)) // pack * pack)

    # Cap the single input-tile transfer size.
    cap = max(pack, (_MAX_IN_TILE_BYTES // max(dim * in_b, 1)) // pack * pack)
    br = min(br, cap)

    # Keep the pipeline >= _MIN_GRID_STEPS deep when the row count allows it.
    if rows >= _MIN_GRID_STEPS * pack:
        br = min(br, max(pack, _round_up(_cdiv(rows, _MIN_GRID_STEPS), pack)))

    br = min(br, _round_up(rows, pack))

    # Prefer a nearby tile that divides rows exactly (avoids a masked partial
    # last block) when one exists within ~25% below the target.
    if rows % br != 0:
        lo = max(pack, ((br * 3) // 4) // pack * pack)
        for cand in range(br, lo - 1, -pack):
            if cand > 0 and rows % cand == 0:
                br = cand
                break
    return br


def _rmsnorm_kernel(x_ref, w_ref, o_ref, *, eps: float, inv_dim: float):
    # Upcast to f32 for the reduction (torch: x.float()).
    x32 = x_ref[...].astype(jnp.float32)
    ms = jnp.sum(x32 * x32, axis=-1, keepdims=True) * inv_dim
    normed = x32 * lax.rsqrt(ms + eps)          # rsqrt -> EUP
    # torch: .type_as(x) -> cast back to input dtype BEFORE applying weight.
    normed = normed.astype(x_ref.dtype)
    # torch: output * self.weight (usual dtype promotion to o_ref dtype).
    o_ref[...] = (normed * w_ref[...]).astype(o_ref.dtype)


def rmsnorm(x: jax.Array, weight: jax.Array, eps: float = 1e-6, *,
            block_rows: int | None = None,
            promote_output: bool = True,
            vmem_limit_bytes: int | None = None) -> jax.Array:
    """RMSNorm over the last axis of x, scaled by `weight` (shape [dim])."""
    orig_shape = x.shape
    dim = orig_shape[-1]
    rows = math.prod(orig_shape[:-1]) if len(orig_shape) > 1 else 1
    x2d = x.reshape(rows, dim)

    if promote_output:
        # Matches torch promotion: bf16 x with f32 weight -> f32 output.
        out_dtype = jnp.result_type(x.dtype, weight.dtype)
    else:
        # Bandwidth fast path (opt-in; deviates from torch promotion when
        # weight is wider than x): keep output and weight in x.dtype.
        out_dtype = x.dtype
        weight = weight.astype(x.dtype)
    w2d = weight.reshape(1, dim)

    pack = max(_sublane_pack(x.dtype), _sublane_pack(out_dtype))
    if block_rows is None:
        block_rows = _pick_block_rows(rows, dim, x.dtype, out_dtype)
    else:
        block_rows = max(pack, _round_up(block_rows, pack))

    grid = _cdiv(rows, block_rows)

    in_b = jnp.dtype(x.dtype).itemsize
    out_b = jnp.dtype(out_dtype).itemsize
    w_b = jnp.dtype(weight.dtype).itemsize

    if vmem_limit_bytes is None:
        # Only what this kernel needs: double-buffered in/out tiles, ~2 f32
        # intermediate tiles, the resident weight block, plus slack for
        # compiler-internal scratch.
        tile_bytes = block_rows * dim * (2 * (in_b + out_b) + 2 * 4)
        vmem_limit_bytes = min(
            _round_up(tile_bytes + 2 * dim * w_b + 8 * 1024 * 1024,
                      1024 * 1024),
            48 * 1024 * 1024)

    # TODO(synk): for dim < 128 the last-dim lane utilization is <100%; real
    # LLM dims (>=2048, multiples of 128) are already lane-dense.

    cost = pl.CostEstimate(
        # square, reduce-add, scale, normalize-mul, cast, weight-mul.
        flops=6 * rows * dim,
        transcendentals=rows,                      # one rsqrt per row
        bytes_accessed=rows * dim * (in_b + out_b) + dim * w_b,
    )

    out2d = pl.pallas_call(
        functools.partial(_rmsnorm_kernel, eps=eps, inv_dim=1.0 / dim),
        out_shape=jax.ShapeDtypeStruct((rows, dim), out_dtype),
        grid_spec=pltpu.PrefetchScalarGridSpec(
            num_scalar_prefetch=0,
            grid=(grid,),
            in_specs=[
                pl.BlockSpec((block_rows, dim), lambda i: (i, 0)),
                pl.BlockSpec((1, dim), lambda i: (0, 0)),   # weight resident
            ],
            out_specs=pl.BlockSpec((block_rows, dim), lambda i: (i, 0)),
        ),
        compiler_params=pltpu.CompilerParams(
            dimension_semantics=("parallel",),
            vmem_limit_bytes=int(vmem_limit_bytes)),
        cost_estimate=cost,
    )(x2d, w2d)

    return out2d.reshape(orig_shape)


def _reference(x, weight, eps):
    x32 = x.astype(jnp.float32)
    normed = (x32 * lax.rsqrt(jnp.mean(x32 * x32, axis=-1, keepdims=True) + eps)
              ).astype(x.dtype)
    return normed * weight


if __name__ == "__main__":
    eps = 1e-6
    key = jax.random.PRNGKey(0)
    k1, k2, k3, k4 = jax.random.split(key, 4)

    # Case 1: small shape consistent with the module (batch=2, seq=8, dim=32).
    batch, seq, dim = 2, 8, 32
    x = jax.random.normal(k1, (batch, seq, dim), dtype=jnp.float32)
    weight = jnp.ones((dim,), dtype=jnp.float32)   # nn.Parameter(torch.ones(dim))
    out = jax.block_until_ready(rmsnorm(x, weight, eps=eps))
    ref = _reference(x, weight, eps)
    assert out.shape == ref.shape and out.dtype == ref.dtype
    assert jnp.allclose(out, ref, atol=1e-5, rtol=1e-5)

    # Case 2: ragged row count (exercises the partial-last-block path: no
    # wrapper-side padding or output slicing, OOB rows are masked on store).
    x2 = jax.random.normal(k2, (5, 32), dtype=jnp.float32)
    w2 = 1.0 + 0.1 * jax.random.normal(k3, (32,), dtype=jnp.float32)
    out2 = jax.block_until_ready(rmsnorm(x2, w2, eps=eps))
    ref2 = _reference(x2, w2, eps)
    assert out2.shape == ref2.shape and out2.dtype == ref2.dtype
    assert jnp.allclose(out2, ref2, atol=1e-5, rtol=1e-5)

    # Case 3: bf16 activations with f32 weight — default torch-style promotion
    # (f32 output) and the opt-in bandwidth fast path (bf16 output).
    x3 = jax.random.normal(k4, (4, 128), dtype=jnp.bfloat16)
    w3 = jnp.ones((128,), dtype=jnp.float32)
    out3 = jax.block_until_ready(rmsnorm(x3, w3, eps=eps))
    ref3 = _reference(x3, w3, eps)
    assert out3.shape == ref3.shape and out3.dtype == jnp.float32
    assert jnp.allclose(out3, ref3, atol=2e-2, rtol=2e-2)

    out3f = jax.block_until_ready(
        rmsnorm(x3, w3, eps=eps, promote_output=False))
    assert out3f.dtype == jnp.bfloat16
    assert jnp.allclose(out3f.astype(jnp.float32), ref3.astype(jnp.float32),
                        atol=2e-2, rtol=2e-2)

    print("KERNEL_OK")
</pallas_src>

<mosaic_0001>
module attributes {stable_mosaic.version = 11 : i64} {
  func.func @_rmsnorm_kernel(%arg0: i32, %arg1: memref<16x32xf32, #tpu.memory_space<vmem>>, %arg2: memref<1x32xf32, #tpu.memory_space<vmem>>, %arg3: memref<16x32xf32, #tpu.memory_space<vmem>>) attributes {dimension_semantics = [#tpu.dimension_semantics<parallel>], iteration_bounds = array<i64: 1>, scalar_prefetch = 0 : i64, scratch_operands = 0 : i64, tpu.core_type = #tpu.core_type<tc>, window_params = [{transform_indices = @transform_0, window_bounds = array<i64: 16, 32>}, {pipeline_mode = #tpu.pipeline_mode<synchronous>, transform_indices = @transform_1, window_bounds = array<i64: 1, 32>}, {transform_indices = @transform_2, window_bounds = array<i64: 16, 32>}]} {
    %c0 = arith.constant 0 : index
    %c0_0 = arith.constant 0 : index
    %0 = vector.load %arg1[%c0, %c0_0] : memref<16x32xf32, #tpu.memory_space<vmem>>, vector<16x32xf32>
    %1 = arith.mulf %0, %0 : vector<16x32xf32>
    %cst = arith.constant dense<0.000000e+00> : vector<16xf32>
    %2 = vector.multi_reduction <add>, %1, %cst [1] : vector<16x32xf32> to vector<16xf32>
    %3 = vector.shape_cast %2 : vector<16xf32> to vector<16x1xf32>
    %cst_1 = arith.constant 3.125000e-02 : f32
    %4 = vector.broadcast %cst_1 : f32 to vector<16x1xf32>
    %5 = arith.mulf %3, %4 : vector<16x1xf32>
    %cst_2 = arith.constant 9.99999997E-7 : f32
    %6 = vector.broadcast %cst_2 : f32 to vector<16x1xf32>
    %7 = arith.addf %5, %6 : vector<16x1xf32>
    %8 = math.rsqrt %7 : vector<16x1xf32>
    %9 = vector.broadcast %8 : vector<16x1xf32> to vector<16x32xf32>
    %10 = arith.mulf %0, %9 : vector<16x32xf32>
    %c0_3 = arith.constant 0 : index
    %c0_4 = arith.constant 0 : index
    %11 = vector.load %arg2[%c0_3, %c0_4] : memref<1x32xf32, #tpu.memory_space<vmem>>, vector<1x32xf32>
    %12 = vector.broadcast %11 : vector<1x32xf32> to vector<16x32xf32>
    %13 = arith.mulf %10, %12 : vector<16x32xf32>
    %c0_5 = arith.constant 0 : index
    %c0_6 = arith.constant 0 : index
    %14 = vector.load %arg3[%c0_5, %c0_6] : memref<16x32xf32, #tpu.memory_space<vmem>>, vector<16x32xf32>
    tpu.vector_store %arg3[%c0_5, %c0_6], %13 {strides = array<i32>} : memref<16x32xf32, #tpu.memory_space<vmem>>, vector<16x32xf32>,
    return
  }
  func.func @transform_0(%arg0: i32) -> (i32, i32) {
    %c0_i32 = arith.constant 0 : i32
    %c0_i32_0 = arith.constant 0 : i32
    return %arg0, %c0_i32 : i32, i32
  }
  func.func @transform_1(%arg0: i32) -> (i32, i32) {
    %c0_i32 = arith.constant 0 : i32
    %c0_i32_0 = arith.constant 0 : i32
    %c0_i32_1 = arith.constant 0 : i32
    return %c0_i32, %c0_i32_0 : i32, i32
  }
  func.func @transform_2(%arg0: i32) -> (i32, i32) {
    %c0_i32 = arith.constant 0 : i32
    %c0_i32_0 = arith.constant 0 : i32
    return %arg0, %c0_i32 : i32, i32
  }
}

</mosaic_0001>

<llo_original>
// kernel: tpu_custom_call.1
$region0: #{tpu_custom_call.1}
  #allocation0 [shape = 'u32[]', space=smem, size = 0x4, offset = 0x4, fixed_abs, tag = 'smem constant byte address 0x4 - core index']
  #allocation1 [shape = 'u32[144,128]{1,0:T(1,128)}', space=vmem, size = 0x12000, scoped, tag = 'internal scratch']
  %s0 = inlined_call_operand.hbm [shape: f32[16,32], index: 0, kind: input, shape index: {}]
  %s1 = inlined_call_operand.vmem [shape: f32[1,32], index: 1, kind: input, shape index: {}]
  %s2 = inlined_call_operand.hbm [shape: f32[16,32], index: 2, kind: output, shape index: {}]
  %s3 = sld [smem:[#allocation0]]
  $region22: #{tpu_custom_call.1} parent=0
    _
  %s5 = ssub.s32 1, %s3
  %s6 = scalar_select 0, %s5, %s3
  $region1: #{tpu_custom_call.1} parent=0
    #allocation2 [shape = 'u8[8192]{0}', space=vmem, size = 0x2000, scoped, tag = 'input window, operand 0, single buffered']
    #allocation3 [shape = 's32[1]{0}', space=sflag, size = 0x4, scoped, tag = 'scoped memory for tpu_custom_call.1']
    #allocation4 [shape = 's32[1]{0}', space=sflag, size = 0x4, scoped, tag = 'scoped memory for tpu_custom_call.1']
    #allocation5 [shape = 'u8[8192]{0}', space=vmem, size = 0x2000, scoped, tag = 'output window, operand 0, single buffered']
    %7 = vsyncpa [#allocation3], 0
    %8 = vsyncpa [#allocation4], 0
    // Predicated region
    $region2: #{tpu_custom_call.1} parent=1 // pred_check
      _
    $region3: #{tpu_custom_call.1} parent=1 // pred_check_branch
      %10 = sbr.rel (0) target = $region5
    $region4: #{tpu_custom_call.1} parent=1 // pred_region
      %s12 = ssub.s32 256, 256
      %13 = vsyncadd [#allocation3], %s12
      %s14 = sshll.u32 [#allocation2], 4
      %s15 = int_to_ptr.vmem [resolvable:$true] %s14
      %20 = dma.hbm_to_vmem [thread:$0]  %s0, 256, %s15, [#allocation3], 128, 128, 8
    $region5: #{tpu_custom_call.1} parent=1 // pred_fallthru
      _
    // Predicated region
    $region6: #{tpu_custom_call.1} parent=1 // pred_check
      _
    $region7: #{tpu_custom_call.1} parent=1 // pred_check_branch
      %22 = sbr.rel (0) target = $region9
    $region8: #{tpu_custom_call.1} parent=1 // pred_region
      _
    $region9: #{tpu_custom_call.1} parent=1 // pred_fallthru
      _
    // Predicated region
    $region10: #{tpu_custom_call.1} parent=1 // pred_check
      _
    $region11: #{tpu_custom_call.1} parent=1 // pred_check_branch
      %24 = sbr.rel (0) target = $region13
    $region12: #{tpu_custom_call.1} parent=1 // pred_region
      %25 = dma.done [#allocation3], 256
    $region13: #{tpu_custom_call.1} parent=1 // pred_fallthru
      _
    %v26 = vld [vmem:[#allocation2] sm:$0xff]
    %v27 = vld [vmem:[#allocation2 + $0x8] sm:$0xff]
    %v28 = vmul.f32 %v26, %v26
    %v29 = vmul.f32 %v27, %v27
    %vm30 = vcmask 261120
    %v31 = vsel %vm30, %v28, 0.0
    %32 = vadd.xlane.f32.xlu0 %v31
    %v33 = vpop.xlane.xlu0 %32
    %v34 = vsel %vm30, %v29, 0.0
    %35 = vadd.xlane.f32.xlu0 %v34
    %v36 = vpop.xlane.xlu0 %35
    %v37 = vmul.f32 %v33, 0.03125
    %v38 = vmul.f32 %v36, 0.03125
    %v39 = vadd.f32 %v37, 1e-06
    %v40 = vadd.f32 %v38, 1e-06
    %v41 = vrsqrt.pop %v39
    %v42 = vrsqrt.pop %v40
    %v43 = vmul.f32 %v26, %v41
    %v44 = vmul.f32 %v27, %v42
    %v45 = vld [vmem:[%s1] sm:$0x1]
    %v47 = vlaneseq
    %v48 = vshrl.u32 %v47, 7
    %v49 = vsub.s32 0, %v48
    %v50 = vrot.slane %v45, %v49
    %v52 = vmul.f32 %v43, %v50
    %v53 = vmul.f32 %v44, %v50
    %54 = vst.msk [vmem:[#allocation5] sm:$0xff] %vm30, %v52
    %55 = vst.msk [vmem:[#allocation5 + $0x8] sm:$0xff] %vm30, %v53
    // Predicated region
    $region14: #{tpu_custom_call.1} parent=1 // pred_check
      _
    $region15: #{tpu_custom_call.1} parent=1 // pred_check_branch
      %57 = sbr.rel (0) target = $region17
    $region16: #{tpu_custom_call.1} parent=1 // pred_region
      %s59 = ssub.s32 256, 256
      %60 = vsyncadd [#allocation4], %s59
      %s61 = sshll.u32 [#allocation5], 4
      %s62 = int_to_ptr.vmem [resolvable:$true] %s61
      %67 = dma.vmem_to_hbm [thread:$0]  %s62, 256, %s2, [#allocation4], 128, 128, 8
    $region17: #{tpu_custom_call.1} parent=1 // pred_fallthru
      _
    // Predicated region
    $region18: #{tpu_custom_call.1} parent=1 // pred_check
      _
    $region19: #{tpu_custom_call.1} parent=1 // pred_check_branch
      %69 = sbr.rel (0) target = $region21
    $region20: #{tpu_custom_call.1} parent=1 // pred_region
      %70 = dma.done [#allocation4], 256
    $region21: #{tpu_custom_call.1} parent=1 // pred_fallthru
      _
    %71 = vsyncpa [#allocation3], 1
    %72 = vsyncpa [#allocation4], 1

</llo_original>
